<compile_context>
chip_gen: v5e
topology: v5e:2x2
jax: 0.10.0
libtpu: 0.0.40
codegen_flags: <defaults>
</compile_context>

<pallas_src>
import functools

import jax
import jax.numpy as jnp
from jax import lax
from jax.experimental import pallas as pl
from jax.experimental.pallas import tpu as pltpu


def _cosine_sim_kernel(x_ref, y_ref, out_ref, *, eps):
    """Process one (TM, Dp) row block of each feature tensor and accumulate the
    sum of per-row cosine similarities into the VMEM-resident (1, 1) output."""

    @pl.when(pl.program_id(0) == 0)
    def _():
        out_ref[...] = jnp.zeros_like(out_ref)

    x = x_ref[...].astype(jnp.float32)                # (TM, Dp)
    y = y_ref[...].astype(jnp.float32)

    # Per-row reductions (lane reductions go to the XLU); no NxN temporaries.
    s_xy = jnp.sum(x * y, axis=1, keepdims=True)      # (TM, 1)
    s_xx = jnp.sum(x * x, axis=1, keepdims=True)
    s_yy = jnp.sum(y * y, axis=1, keepdims=True)

    # cos = s_xy / max(||x||*||y||, eps) == s_xy * rsqrt(max(s_xx*s_yy, eps^2))
    # (sqrt is monotone, so the clamp commutes).  rsqrt is one EUP op instead of
    # two sqrts plus a VPU divide.
    eps_f = jnp.float32(eps)
    cos = s_xy * lax.rsqrt(jnp.maximum(s_xx * s_yy, eps_f * eps_f))

    # Zero-padded rows give s_xy == 0 -> cos == 0 -> contribute nothing.
    out_ref[...] += jnp.sum(cos, axis=(0, 1), keepdims=True)


def cosine_sim_loss(features_ori, features_aug, *, eps=1e-8, block_rows=256):
    """Pallas implementation of CosineSimLoss.forward:
    F.cosine_similarity(features_ori, features_aug, dim=1).mean()."""
    assert features_ori.shape == features_aug.shape
    assert features_ori.ndim >= 2

    # cosine_similarity reduces dim=1; every other index position is a "row".
    def to_rows(a):
        a = jnp.moveaxis(a.astype(jnp.float32), 1, -1)   # (..., C)
        return a.reshape(-1, a.shape[-1])

    x = to_rows(features_ori)
    y = to_rows(features_aug)
    rows, d = x.shape

    # Lane-dense padding: feature dim to a multiple of 128, rows so the grid
    # tiles evenly with a sublane-aligned (multiple of 8) row block.  Zero
    # padding changes no dot product or norm, and padded rows contribute 0.
    dp = max(128, ((d + 127) // 128) * 128)
    tm = min(block_rows, ((rows + 7) // 8) * 8)
    rows_p = ((rows + tm - 1) // tm) * tm
    pad = ((0, rows_p - rows), (0, dp - d))
    x = jnp.pad(x, pad)
    y = jnp.pad(y, pad)

    n_blocks = rows_p // tm
    kernel = functools.partial(_cosine_sim_kernel, eps=float(eps))

    out = pl.pallas_call(
        kernel,
        out_shape=jax.ShapeDtypeStruct((1, 1), jnp.float32),
        grid=(n_blocks,),
        in_specs=[
            pl.BlockSpec((tm, dp), lambda i: (i, 0)),
            pl.BlockSpec((tm, dp), lambda i: (i, 0)),
        ],
        # Same (1, 1) block for every grid step -> VMEM-resident accumulator.
        out_specs=pl.BlockSpec((1, 1), lambda i: (0, 0)),
        compiler_params=pltpu.CompilerParams(
            dimension_semantics=("arbitrary",),
            vmem_limit_bytes=32 * 1024 * 1024,   # safe on v5e/v6e/v7x
        ),
    )(x, y)
    # Mean over the true (unpadded) number of rows.
    return out[0, 0] / jnp.float32(rows)


def _cosine_sim_loss_ref(features_ori, features_aug, eps=1e-8):
    """Pure-JAX reference mirroring F.cosine_similarity(...).mean()."""
    x = jnp.moveaxis(features_ori.astype(jnp.float32), 1, -1)
    y = jnp.moveaxis(features_aug.astype(jnp.float32), 1, -1)
    x = x.reshape(-1, x.shape[-1])
    y = y.reshape(-1, y.shape[-1])
    dot = jnp.sum(x * y, axis=-1)
    nx = jnp.linalg.norm(x, axis=-1)
    ny = jnp.linalg.norm(y, axis=-1)
    cos = dot / jnp.maximum(nx * ny, eps)
    return jnp.mean(cos)


if __name__ == "__main__":
    key = jax.random.PRNGKey(0)
    k1, k2 = jax.random.split(key)
    bsz, feat_dim = 8, 32
    f_ori = jax.random.normal(k1, (bsz, feat_dim), dtype=jnp.float32)
    f_aug = jax.random.normal(k2, (bsz, feat_dim), dtype=jnp.float32)

    loss = cosine_sim_loss(f_ori, f_aug)
    jax.block_until_ready(loss)

    ref = _cosine_sim_loss_ref(f_ori, f_aug)
    assert jnp.allclose(loss, ref, rtol=1e-5, atol=1e-5), (loss, ref)

    print("KERNEL_OK")
</pallas_src>

<mosaic_0001>
module attributes {stable_mosaic.version = 11 : i64} {
  func.func @_cosine_sim_kernel(%arg0: i32, %arg1: memref<8x128xf32, #tpu.memory_space<vmem>>, %arg2: memref<8x128xf32, #tpu.memory_space<vmem>>, %arg3: memref<1x1xf32, #tpu.memory_space<vmem>>) attributes {dimension_semantics = [#tpu.dimension_semantics<arbitrary>], iteration_bounds = array<i64: 1>, scalar_prefetch = 0 : i64, scratch_operands = 0 : i64, tpu.core_type = #tpu.core_type<tc>, window_params = [{transform_indices = @transform_0, window_bounds = array<i64: 8, 128>}, {transform_indices = @transform_1, window_bounds = array<i64: 8, 128>}, {pipeline_mode = #tpu.pipeline_mode<synchronous>, transform_indices = @transform_2, window_bounds = array<i64: 1, 1>}]} {
    %c0_i32 = arith.constant 0 : i32
    %0 = arith.cmpi eq, %arg0, %c0_i32 : i32
    %1 = arith.extui %0 : i1 to i32
    %c0_i32_0 = arith.constant 0 : i32
    %2 = arith.cmpi ne, %1, %c0_i32_0 : i32
    scf.if %2 {
      %cst_13 = arith.constant 0.000000e+00 : f32
      %28 = vector.broadcast %cst_13 : f32 to vector<1x1xf32>
      %c0_14 = arith.constant 0 : index
      %c0_15 = arith.constant 0 : index
      %29 = vector.load %arg3[%c0_14, %c0_15] : memref<1x1xf32, #tpu.memory_space<vmem>>, vector<1x1xf32>
      tpu.vector_store %arg3[%c0_14, %c0_15], %28 {strides = array<i32>} : memref<1x1xf32, #tpu.memory_space<vmem>>, vector<1x1xf32>,
    } else {
    }
    %c0 = arith.constant 0 : index
    %c0_1 = arith.constant 0 : index
    %3 = vector.load %arg1[%c0, %c0_1] : memref<8x128xf32, #tpu.memory_space<vmem>>, vector<8x128xf32>
    %c0_2 = arith.constant 0 : index
    %c0_3 = arith.constant 0 : index
    %4 = vector.load %arg2[%c0_2, %c0_3] : memref<8x128xf32, #tpu.memory_space<vmem>>, vector<8x128xf32>
    %5 = arith.mulf %3, %4 : vector<8x128xf32>
    %cst = arith.constant dense<0.000000e+00> : vector<8xf32>
    %6 = vector.multi_reduction <add>, %5, %cst [1] : vector<8x128xf32> to vector<8xf32>
    %7 = vector.shape_cast %6 : vector<8xf32> to vector<8x1xf32>
    %8 = arith.mulf %3, %3 : vector<8x128xf32>
    %cst_4 = arith.constant dense<0.000000e+00> : vector<8xf32>
    %9 = vector.multi_reduction <add>, %8, %cst_4 [1] : vector<8x128xf32> to vector<8xf32>
    %10 = vector.shape_cast %9 : vector<8xf32> to vector<8x1xf32>
    %11 = arith.mulf %4, %4 : vector<8x128xf32>
    %cst_5 = arith.constant dense<0.000000e+00> : vector<8xf32>
    %12 = vector.multi_reduction <add>, %11, %cst_5 [1] : vector<8x128xf32> to vector<8xf32>
    %13 = vector.shape_cast %12 : vector<8xf32> to vector<8x1xf32>
    %14 = arith.mulf %10, %13 : vector<8x1xf32>
    %cst_6 = arith.constant 9.99999993E-9 : f32
    %cst_7 = arith.constant 9.99999993E-9 : f32
    %15 = arith.mulf %cst_6, %cst_7 : f32
    %16 = vector.broadcast %15 : f32 to vector<8x1xf32>
    %17 = arith.maximumf %14, %16 : vector<8x1xf32>
    %18 = math.rsqrt %17 : vector<8x1xf32>
    %19 = arith.mulf %7, %18 : vector<8x1xf32>
    %c0_8 = arith.constant 0 : index
    %c0_9 = arith.constant 0 : index
    %20 = vector.load %arg3[%c0_8, %c0_9] : memref<1x1xf32, #tpu.memory_space<vmem>>, vector<1x1xf32>
    %21 = vector.shape_cast %19 : vector<8x1xf32> to vector<1x8x1xf32>
    %cst_10 = arith.constant dense<0.000000e+00> : vector<1xf32>
    %22 = vector.multi_reduction <add>, %21, %cst_10 [1, 2] : vector<1x8x1xf32> to vector<1xf32>
    %23 = vector.shape_cast %22 : vector<1xf32> to vector<1x1x1xf32>
    %24 = vector.extract %23[0, 0, 0] : f32 from vector<1x1x1xf32>
    %25 = vector.broadcast %24 : f32 to vector<1x1xf32>
    %26 = arith.addf %20, %25 : vector<1x1xf32>
    %c0_11 = arith.constant 0 : index
    %c0_12 = arith.constant 0 : index
    %27 = vector.load %arg3[%c0_11, %c0_12] : memref<1x1xf32, #tpu.memory_space<vmem>>, vector<1x1xf32>
    tpu.vector_store %arg3[%c0_11, %c0_12], %26 {strides = array<i32>} : memref<1x1xf32, #tpu.memory_space<vmem>>, vector<1x1xf32>,
    return
  }
  func.func @transform_0(%arg0: i32) -> (i32, i32) {
    %c0_i32 = arith.constant 0 : i32
    %c0_i32_0 = arith.constant 0 : i32
    return %arg0, %c0_i32 : i32, i32
  }
  func.func @transform_1(%arg0: i32) -> (i32, i32) {
    %c0_i32 = arith.constant 0 : i32
    %c0_i32_0 = arith.constant 0 : i32
    return %arg0, %c0_i32 : i32, i32
  }
  func.func @transform_2(%arg0: i32) -> (i32, i32) {
    %c0_i32 = arith.constant 0 : i32
    %c0_i32_0 = arith.constant 0 : i32
    %c0_i32_1 = arith.constant 0 : i32
    return %c0_i32, %c0_i32_0 : i32, i32
  }
}

</mosaic_0001>

<llo_original>
// kernel: tpu_custom_call.1
$region0: #{tpu_custom_call.1}
  #allocation0 [shape = 'u32[]', space=smem, size = 0x4, offset = 0x4, fixed_abs, tag = 'smem constant byte address 0x4 - core index']
  #allocation1 [shape = 'u32[72,128]{1,0:T(1,128)}', space=vmem, size = 0x9000, scoped, tag = 'internal scratch']
  %s0 = inlined_call_operand.hbm [shape: f32[8,128], index: 0, kind: input, shape index: {}]
  %s1 = inlined_call_operand.hbm [shape: f32[8,128], index: 1, kind: input, shape index: {}]
  %s2 = inlined_call_operand.hbm [shape: f32[1,1], index: 2, kind: output, shape index: {}]
  %s3 = sld [smem:[#allocation0]]
  $region30: #{tpu_custom_call.1} parent=0
    _
  %s5 = ssub.s32 1, %s3
  %s6 = scalar_select 0, %s5, %s3
  $region1: #{tpu_custom_call.1} parent=0
    #allocation2 [shape = 'u8[4096]{0}', space=vmem, size = 0x1000, scoped, tag = 'input window, operand 0, single buffered']
    #allocation3 [shape = 's32[1]{0}', space=sflag, size = 0x4, scoped, tag = 'scoped memory for tpu_custom_call.1']
    #allocation4 [shape = 's32[1]{0}', space=sflag, size = 0x4, scoped, tag = 'scoped memory for tpu_custom_call.1']
    #allocation5 [shape = 'u8[4096]{0}', space=vmem, size = 0x1000, scoped, tag = 'input window, operand 1, single buffered']
    #allocation6 [shape = 's32[1]{0}', space=sflag, size = 0x4, scoped, tag = 'scoped memory for tpu_custom_call.1']
    #allocation7 [shape = 'u8[512]{0}', space=vmem, size = 0x400, scoped, tag = 'output window, operand 0, single buffered']
    %7 = vsyncpa [#allocation3], 0
    %8 = vsyncpa [#allocation6], 0
    %9 = vsyncpa [#allocation4], 0
    // Predicated region
    $region2: #{tpu_custom_call.1} parent=1 // pred_check
      _
    $region3: #{tpu_custom_call.1} parent=1 // pred_check_branch
      %11 = sbr.rel (0) target = $region5
    $region4: #{tpu_custom_call.1} parent=1 // pred_region
      %13 = vsyncadd [#allocation3], 0
      %s15 = sshll.u32 %s0, 4
      %s16 = int_to_ptr.hbm [resolvable:$true] %s15
      %s17 = sshll.u32 [#allocation2], 4
      %s18 = int_to_ptr.vmem [resolvable:$true] %s17
      %20 = dma.hbm_to_vmem [thread:$0]  %s16, 128, %s18, [#allocation3]
    $region5: #{tpu_custom_call.1} parent=1 // pred_fallthru
      _
    // Predicated region
    $region6: #{tpu_custom_call.1} parent=1 // pred_check
      _
    $region7: #{tpu_custom_call.1} parent=1 // pred_check_branch
      %22 = sbr.rel (0) target = $region9
    $region8: #{tpu_custom_call.1} parent=1 // pred_region
      %24 = vsyncadd [#allocation6], 0
      %s26 = sshll.u32 %s1, 4
      %s27 = int_to_ptr.hbm [resolvable:$true] %s26
      %s28 = sshll.u32 [#allocation5], 4
      %s29 = int_to_ptr.vmem [resolvable:$true] %s28
      %31 = dma.hbm_to_vmem [thread:$0]  %s27, 128, %s29, [#allocation6]
    $region9: #{tpu_custom_call.1} parent=1 // pred_fallthru
      _
    // Predicated region
    $region10: #{tpu_custom_call.1} parent=1 // pred_check
      _
    $region11: #{tpu_custom_call.1} parent=1 // pred_check_branch
      %33 = sbr.rel (0) target = $region13
    $region12: #{tpu_custom_call.1} parent=1 // pred_region
      %35 = dma.done [#allocation3], 128
    $region13: #{tpu_custom_call.1} parent=1 // pred_fallthru
      _
    // Predicated region
    $region14: #{tpu_custom_call.1} parent=1 // pred_check
      _
    $region15: #{tpu_custom_call.1} parent=1 // pred_check_branch
      %37 = sbr.rel (0) target = $region17
    $region16: #{tpu_custom_call.1} parent=1 // pred_region
      %39 = dma.done [#allocation6], 128
    $region17: #{tpu_custom_call.1} parent=1 // pred_fallthru
      _
    %p40 = scmp.eq.s32.totalorder 0, 0
    // Predicated region
    $region18: #{tpu_custom_call.1} parent=1 // pred_check
      %p41 = pneg %p40
    $region19: #{tpu_custom_call.1} parent=1 // pred_check_branch
      %43 = sbr.rel (%p41) target = $region21
    $region20: #{tpu_custom_call.1} parent=1 // pred_region
      %vm44 = vcmask 0
      %45 = vst.msk [vmem:[#allocation7] sm:$0x1] %vm44, 0.0
    $region21: #{tpu_custom_call.1} parent=1 // pred_fallthru
      _
    %v46 = vld [vmem:[#allocation2] sm:$0xff]
    %v47 = vld [vmem:[#allocation5] sm:$0xff]
    %v48 = vmul.f32 %v46, %v47
    %49 = vadd.xlane.f32.xlu0 %v48
    %v50 = vpop.xlane.xlu0 %49
    %v51 = vmul.f32 %v46, %v46
    %52 = vadd.xlane.f32.xlu0 %v51
    %v53 = vpop.xlane.xlu0 %52
    %v54 = vmul.f32 %v47, %v47
    %55 = vadd.xlane.f32.xlu0 %v54
    %v56 = vpop.xlane.xlu0 %55
    %v57 = vmul.f32 %v53, %v56
    %v58 = vmax.f32 %v57, 1e-16
    %v59 = vrsqrt.pop %v58
    %v60 = vmul.f32 %v59, %v58
    %v61 = vmul.f32 %v60, %v59
    %v62 = vmul.f32 0.5, %v61
    %v63 = vsub.f32 1.5, %v62
    %v64 = vmul.f32 %v59, %v63
    %vm65 = vweird.f32 %v58
    %vm66 = vweird.f32 %v59
    %vm67 = vmor %vm65, %vm66
    %v68 = vsel %vm67, %v59, %v64
    %v69 = vmul.f32 %v50, %v68
    %v70 = vld [vmem:[#allocation7] sm:$0x1]
    %vm71 = vcmask 7168
    %v72 = vsel %vm71, %v69, 0.0
    %73 = vadd.xlane.f32.xlu0 %v72
    %v74 = vpop.xlane.xlu0 %73
    %v75 = vrot.slane %v74, 4
    %v76 = vadd.f32 %v74, %v75
    %v77 = vrot.slane %v76, 2
    %v78 = vadd.f32 %v76, %v77
    %v79 = vrot.slane %v78, 1
    %v80 = vadd.f32 %v78, %v79
    %s81 = vtos %v80
    %v82 = vstv %s81
    %v83 = vadd.f32 %v70, %v82
    %vm84 = vcmask 0
    %85 = vst.msk [vmem:[#allocation7] sm:$0x1] %vm84, %v83
    // Predicated region
    $region22: #{tpu_custom_call.1} parent=1 // pred_check
      _
    $region23: #{tpu_custom_call.1} parent=1 // pred_check_branch
      %87 = sbr.rel (0) target = $region25
    $region24: #{tpu_custom_call.1} parent=1 // pred_region
      %89 = vsyncadd [#allocation4], 0
      %s91 = sshll.u32 [#allocation7], 4
      %s92 = int_to_ptr.vmem [resolvable:$true] %s91
      %s93 = sshll.u32 %s2, 4
      %s94 = int_to_ptr.hbm [resolvable:$true] %s93
      %96 = dma.vmem_to_hbm [thread:$0]  %s92, 16, %s94, [#allocation4]
    $region25: #{tpu_custom_call.1} parent=1 // pred_fallthru
      _
    // Predicated region
    $region26: #{tpu_custom_call.1} parent=1 // pred_check
      _
    $region27: #{tpu_custom_call.1} parent=1 // pred_check_branch
      %98 = sbr.rel (0) target = $region29
    $region28: #{tpu_custom_call.1} parent=1 // pred_region
      %100 = dma.done [#allocation4], 16
    $region29: #{tpu_custom_call.1} parent=1 // pred_fallthru
      _
    %101 = vsyncpa [#allocation3], 1
    %102 = vsyncpa [#allocation6], 1
    %103 = vsyncpa [#allocation4], 1

</llo_original>
